<compile_context>
chip_gen: v7x
topology: tpu7x:2x2x1
jax: 0.10.0
libtpu: 0.0.40
codegen_flags: <defaults>
</compile_context>

<pallas_src>
import jax
import jax.numpy as jnp
from jax import lax
from jax.experimental import pallas as pl
from jax.experimental.pallas import tpu as pltpu


def _round_up(x, m):
    return ((x + m - 1) // m) * m


# ---------------------------------------------------------------------------
# Small-shape path: one block, no grid loop, no padding.
# ---------------------------------------------------------------------------
def _linear_sigmoid_single_block_kernel(x_ref, w_ref, b_ref, o_ref):
    # x_ref: (B, IN)   w_ref: (OUT, IN)   b_ref: (1, OUT)   o_ref: (B, OUT)
    z = lax.dot_general(
        x_ref[...],
        w_ref[...],
        dimension_numbers=(((1,), (1,)), ((), ())),   # x @ W.T, no transpose pass
        preferred_element_type=jnp.float32,
    )
    o_ref[...] = jax.nn.sigmoid(z + b_ref[...]).astype(o_ref.dtype)


# ---------------------------------------------------------------------------
# Tiled path: (M, N, K) grid, K innermost, accumulate directly into o_ref.
# ---------------------------------------------------------------------------
def _linear_sigmoid_tiled_kernel(x_ref, w_ref, b_ref, o_ref):
    # x_ref: (tm, tk)   w_ref: (tn, tk)   b_ref: (1, tn)   o_ref: (tm, tn) f32
    k = pl.program_id(2)

    @pl.when(k == 0)
    def _():
        o_ref[...] = jnp.zeros_like(o_ref)

    o_ref[...] += lax.dot_general(
        x_ref[...],
        w_ref[...],
        dimension_numbers=(((1,), (1,)), ((), ())),   # contract IN of x with IN of W
        preferred_element_type=jnp.float32,
    )

    @pl.when(k == pl.num_programs(2) - 1)
    def _():
        o_ref[...] = jax.nn.sigmoid(o_ref[...] + b_ref[...])


def _pick_tk(in_features, tk_max=1024):
    """Choose a 128-aligned K tile minimizing zero-padding waste."""
    kp_full = _round_up(in_features, 128)
    if kp_full <= tk_max:
        return kp_full                      # single K tile, minimal padding
    best_tk, best_pad = 128, None
    for cand in (1024, 768, 512, 384, 256, 128):
        if cand > tk_max:
            continue
        pad = _round_up(in_features, cand) - in_features
        if best_pad is None or pad < best_pad:
            best_pad, best_tk = pad, cand
    return best_tk


def linear_sigmoid(x, weight, bias, *, tm_max=512, tn_max=512, tk_max=1024,
                   small_path_bytes=4 << 20):
    """x: (B, IN) f32; weight: (OUT, IN) f32 (PyTorch layout); bias: (OUT,) f32."""
    B, IN = x.shape
    OUT, IN_w = weight.shape
    assert IN == IN_w, "weight inner dim must match x feature dim"

    b2d = bias.reshape(1, OUT)

    total_bytes = 4 * (B * IN + OUT * IN + B * OUT + OUT)
    if total_bytes <= small_path_bytes:
        # Whole problem fits in VMEM: single block, full-array BlockSpecs
        # (block_shape == array dims is legal regardless of (8,128) alignment).
        return pl.pallas_call(
            _linear_sigmoid_single_block_kernel,
            out_shape=jax.ShapeDtypeStruct((B, OUT), jnp.float32),
            grid=(1,),
            in_specs=[
                pl.BlockSpec((B, IN), lambda i: (0, 0)),
                pl.BlockSpec((OUT, IN), lambda i: (0, 0)),
                pl.BlockSpec((1, OUT), lambda i: (0, 0)),
            ],
            out_specs=pl.BlockSpec((B, OUT), lambda i: (0, 0)),
        )(x, weight, b2d)

    # ---------------- tiled path for large layers ----------------
    tm = min(tm_max, _round_up(B, 8))
    tn = min(tn_max, _round_up(OUT, 128))
    tk = _pick_tk(IN, tk_max)

    # Give both v7x TensorCores work when the batch axis has a single block.
    if pl.cdiv(B, tm) == 1 and pl.cdiv(OUT, tn) == 1 and OUT > 128:
        tn = _round_up(pl.cdiv(OUT, 2), 128)

    # Only the reduction axis needs zeros (padded K would otherwise corrupt the
    # dot).  M / N edge blocks are handled by Pallas masking on store.
    Kp = _round_up(IN, tk)
    x_p = x if Kp == IN else jnp.pad(x, ((0, 0), (0, Kp - IN)))
    w_p = weight if Kp == IN else jnp.pad(weight, ((0, 0), (0, Kp - IN)))

    grid = (pl.cdiv(B, tm), pl.cdiv(OUT, tn), Kp // tk)

    return pl.pallas_call(
        _linear_sigmoid_tiled_kernel,
        out_shape=jax.ShapeDtypeStruct((B, OUT), jnp.float32),
        grid_spec=pltpu.PrefetchScalarGridSpec(
            num_scalar_prefetch=0,
            grid=grid,
            in_specs=[
                pl.BlockSpec((tm, tk), lambda i, j, k: (i, k)),   # x tile
                pl.BlockSpec((tn, tk), lambda i, j, k: (j, k)),   # weight tile (OUT, IN)
                pl.BlockSpec((1, tn), lambda i, j, k: (0, j)),    # bias tile
            ],
            out_specs=pl.BlockSpec((tm, tn), lambda i, j, k: (i, j)),
        ),
        compiler_params=pltpu.CompilerParams(
            dimension_semantics=("parallel", "parallel", "arbitrary"),
        ),
    )(x_p, w_p, b2d)


if __name__ == "__main__":
    input_size = 32
    output_size = 16
    batch = 1

    key = jax.random.PRNGKey(0)
    kx, kw, kb = jax.random.split(key, 3)

    # Deterministic synthetic "module parameters" (PyTorch nn.Linear shapes).
    x1 = jax.random.normal(kx, (batch, input_size), dtype=jnp.float32)
    bound = 1.0 / (input_size ** 0.5)
    weight = jax.random.uniform(kw, (output_size, input_size),
                                minval=-bound, maxval=bound, dtype=jnp.float32)
    bias = jax.random.uniform(kb, (output_size,),
                              minval=-bound, maxval=bound, dtype=jnp.float32)

    out = linear_sigmoid(x1, weight, bias)
    jax.block_until_ready(out)

    # Reference check in plain JAX.
    ref = jax.nn.sigmoid(x1 @ weight.T + bias)
    assert out.shape == (batch, output_size)
    assert jnp.allclose(out, ref, atol=1e-5, rtol=1e-5)

    # Exercise the tiled path too (large layer, unaligned K / OUT).
    B2, IN2, OUT2 = 256, 600, 384
    k2x, k2w, k2b = jax.random.split(jax.random.PRNGKey(1), 3)
    x2 = jax.random.normal(k2x, (B2, IN2), dtype=jnp.float32)
    w2 = jax.random.normal(k2w, (OUT2, IN2), dtype=jnp.float32) * 0.05
    b2 = jax.random.normal(k2b, (OUT2,), dtype=jnp.float32)
    out2 = linear_sigmoid(x2, w2, b2, small_path_bytes=0)  # force tiled path
    jax.block_until_ready(out2)
    ref2 = jax.nn.sigmoid(x2 @ w2.T + b2)
    assert jnp.allclose(out2, ref2, atol=1e-4, rtol=1e-4)

    print("KERNEL_OK")
</pallas_src>

<mosaic_0001>
module attributes {stable_mosaic.version = 11 : i64} {
  func.func @_linear_sigmoid_single_block_kernel(%arg0: i32, %arg1: memref<1x32xf32, #tpu.memory_space<vmem>>, %arg2: memref<16x32xf32, #tpu.memory_space<vmem>>, %arg3: memref<1x16xf32, #tpu.memory_space<vmem>>, %arg4: memref<1x16xf32, #tpu.memory_space<vmem>>) attributes {dimension_semantics = [#tpu.dimension_semantics<arbitrary>], iteration_bounds = array<i64: 1>, scalar_prefetch = 0 : i64, scratch_operands = 0 : i64, tpu.core_type = #tpu.core_type<tc>, window_params = [{pipeline_mode = #tpu.pipeline_mode<synchronous>, transform_indices = @transform_0, window_bounds = array<i64: 1, 32>}, {pipeline_mode = #tpu.pipeline_mode<synchronous>, transform_indices = @transform_1, window_bounds = array<i64: 16, 32>}, {pipeline_mode = #tpu.pipeline_mode<synchronous>, transform_indices = @transform_2, window_bounds = array<i64: 1, 16>}, {pipeline_mode = #tpu.pipeline_mode<synchronous>, transform_indices = @transform_3, window_bounds = array<i64: 1, 16>}]} {
    %c0 = arith.constant 0 : index
    %c0_0 = arith.constant 0 : index
    %0 = vector.load %arg1[%c0, %c0_0] : memref<1x32xf32, #tpu.memory_space<vmem>>, vector<1x32xf32>
    %c0_1 = arith.constant 0 : index
    %c0_2 = arith.constant 0 : index
    %1 = vector.load %arg2[%c0_1, %c0_2] : memref<16x32xf32, #tpu.memory_space<vmem>>, vector<16x32xf32>
    %cst = arith.constant dense<0.000000e+00> : vector<1x16xf32>
    %2 = tpu.matmul %0, %1, %cst {dimension_numbers = #tpu.dot_dimension_numbers<[1], [1], [0], [0], [0, 0, 1, 0], [], []>} : vector<1x32xf32>, vector<16x32xf32>, vector<1x16xf32> -> vector<1x16xf32>
    %c0_3 = arith.constant 0 : index
    %c0_4 = arith.constant 0 : index
    %3 = vector.load %arg3[%c0_3, %c0_4] : memref<1x16xf32, #tpu.memory_space<vmem>>, vector<1x16xf32>
    %4 = arith.addf %2, %3 : vector<1x16xf32>
    %5 = arith.negf %4 : vector<1x16xf32>
    %6 = math.exp %5 : vector<1x16xf32>
    %cst_5 = arith.constant 1.000000e+00 : f32
    %7 = vector.broadcast %cst_5 : f32 to vector<1x16xf32>
    %8 = arith.addf %7, %6 : vector<1x16xf32>
    %9 = arith.divf %7, %8 : vector<1x16xf32>
    %c0_6 = arith.constant 0 : index
    %c0_7 = arith.constant 0 : index
    %10 = vector.load %arg4[%c0_6, %c0_7] : memref<1x16xf32, #tpu.memory_space<vmem>>, vector<1x16xf32>
    tpu.vector_store %arg4[%c0_6, %c0_7], %9 {strides = array<i32>} : memref<1x16xf32, #tpu.memory_space<vmem>>, vector<1x16xf32>,
    return
  }
  func.func @transform_0(%arg0: i32) -> (i32, i32) {
    %c0_i32 = arith.constant 0 : i32
    %c0_i32_0 = arith.constant 0 : i32
    %c0_i32_1 = arith.constant 0 : i32
    return %c0_i32, %c0_i32_0 : i32, i32
  }
  func.func @transform_1(%arg0: i32) -> (i32, i32) {
    %c0_i32 = arith.constant 0 : i32
    %c0_i32_0 = arith.constant 0 : i32
    %c0_i32_1 = arith.constant 0 : i32
    return %c0_i32, %c0_i32_0 : i32, i32
  }
  func.func @transform_2(%arg0: i32) -> (i32, i32) {
    %c0_i32 = arith.constant 0 : i32
    %c0_i32_0 = arith.constant 0 : i32
    %c0_i32_1 = arith.constant 0 : i32
    return %c0_i32, %c0_i32_0 : i32, i32
  }
  func.func @transform_3(%arg0: i32) -> (i32, i32) {
    %c0_i32 = arith.constant 0 : i32
    %c0_i32_0 = arith.constant 0 : i32
    %c0_i32_1 = arith.constant 0 : i32
    return %c0_i32, %c0_i32_0 : i32, i32
  }
}

</mosaic_0001>

<llo_original>
// kernel: tpu_custom_call.1
$region0: #{tpu_custom_call.1}
  #allocation0 [shape = 'u32[]', space=smem, size = 0x4, offset = 0x4, fixed_abs, tag = 'smem constant byte address 0x4 - core index']
  #allocation1 [shape = 'u32[144,128]{1,0:T(1,128)}', space=vmem, size = 0x12000, scoped, tag = 'internal scratch']
  %s0 = inlined_call_operand.hbm [shape: f32[1,32], index: 0, kind: input, shape index: {}]
  %s1 = inlined_call_operand.hbm [shape: f32[16,32], index: 1, kind: input, shape index: {}]
  %s2 = inlined_call_operand.vmem [shape: f32[1,16], index: 2, kind: input, shape index: {}]
  %s3 = inlined_call_operand.hbm [shape: f32[1,16], index: 3, kind: output, shape index: {}]
  %s4 = sld [smem:[#allocation0]]
  $region30: #{tpu_custom_call.1} parent=0
    _
  %s6 = ssub.s32 1, %s4
  %s7 = scalar_select 0, %s6, %s4
  $region1: #{tpu_custom_call.1} parent=0
    #allocation2 [shape = 'u8[512]{0}', space=vmem, size = 0x400, scoped, tag = 'input window, operand 0, single buffered']
    #allocation3 [shape = 's32[1]{0}', space=sflag, size = 0x4, scoped, tag = 'scoped memory for tpu_custom_call.1']
    #allocation4 [shape = 's32[1]{0}', space=sflag, size = 0x4, scoped, tag = 'scoped memory for tpu_custom_call.1']
    #allocation5 [shape = 'u8[8192]{0}', space=vmem, size = 0x2000, scoped, tag = 'input window, operand 1, single buffered']
    #allocation6 [shape = 's32[1]{0}', space=sflag, size = 0x4, scoped, tag = 'scoped memory for tpu_custom_call.1']
    #allocation7 [shape = 'u8[512]{0}', space=vmem, size = 0x400, scoped, tag = 'output window, operand 0, single buffered']
    %8 = vsyncpa [#allocation3], 0
    %9 = vsyncpa [#allocation6], 0
    %10 = vsyncpa [#allocation4], 0
    // Predicated region
    $region2: #{tpu_custom_call.1} parent=1 // pred_check
      _
    $region3: #{tpu_custom_call.1} parent=1 // pred_check_branch
      %12 = sbr.rel (0) target = $region5
    $region4: #{tpu_custom_call.1} parent=1 // pred_region
      %s14 = ssub.s32 16, 16
      %15 = vsyncadd [#allocation3], %s14
      %s17 = sshll.u32 [#allocation2], 4
      %s18 = int_to_ptr.vmem [resolvable:$true] %s17
      %20 = dma.hbm_to_vmem [thread:$0]  %s0, 16, %s18, [#allocation3]
    $region5: #{tpu_custom_call.1} parent=1 // pred_fallthru
      _
    // Predicated region
    $region6: #{tpu_custom_call.1} parent=1 // pred_check
      _
    $region7: #{tpu_custom_call.1} parent=1 // pred_check_branch
      %22 = sbr.rel (0) target = $region9
    $region8: #{tpu_custom_call.1} parent=1 // pred_region
      %s24 = ssub.s32 256, 256
      %25 = vsyncadd [#allocation6], %s24
      %s26 = sshll.u32 [#allocation5], 4
      %s27 = int_to_ptr.vmem [resolvable:$true] %s26
      %32 = dma.hbm_to_vmem [thread:$0]  %s1, 256, %s27, [#allocation6], 128, 128, 8
    $region9: #{tpu_custom_call.1} parent=1 // pred_fallthru
      _
    // Predicated region
    $region10: #{tpu_custom_call.1} parent=1 // pred_check
      _
    $region11: #{tpu_custom_call.1} parent=1 // pred_check_branch
      %34 = sbr.rel (0) target = $region13
    $region12: #{tpu_custom_call.1} parent=1 // pred_region
      _
    $region13: #{tpu_custom_call.1} parent=1 // pred_fallthru
      _
    // Predicated region
    $region14: #{tpu_custom_call.1} parent=1 // pred_check
      _
    $region15: #{tpu_custom_call.1} parent=1 // pred_check_branch
      %36 = sbr.rel (0) target = $region17
    $region16: #{tpu_custom_call.1} parent=1 // pred_region
      %37 = dma.done [#allocation3], 16
    $region17: #{tpu_custom_call.1} parent=1 // pred_fallthru
      _
    // Predicated region
    $region18: #{tpu_custom_call.1} parent=1 // pred_check
      _
    $region19: #{tpu_custom_call.1} parent=1 // pred_check_branch
      %39 = sbr.rel (0) target = $region21
    $region20: #{tpu_custom_call.1} parent=1 // pred_region
      %40 = dma.done [#allocation6], 256
    $region21: #{tpu_custom_call.1} parent=1 // pred_fallthru
      _
    %v41 = vld [vmem:[#allocation2] sm:$0x1]
    %v42 = vld [vmem:[#allocation5] sm:$0xff]
    %v43 = vld [vmem:[#allocation5 + $0x8] sm:$0xff]
    %v44 = vld [vmem:[%s2] sm:$0x1]
    %vm45 = vcmask 261120
    %v47 = vsel %vm45, %v41, 0
    %v50 = vsel %vm45, %v42, 0
    %v53 = vsel %vm45, %v43, 0
    %55 = vmatprep.subr.mxu0 0.0
    %56 = vmatpush1.xpose.msra.mxu0 %v50
    %57 = vmatprep.subr.mxu0 0.0
    %58 = vmatpush1.xpose.msra.mxu0 %v53
    %59 = vmatprep.subr.mxu0 0.0
    %60 = vmatpush1.xpose.msra.mxu0 0.0
    %61 = vmatprep.subr.mxu0 0.0
    %62 = vmatpush1.xpose.msra.mxu0 0.0
    %63 = vmatprep.subr.mxu0 0.0
    %64 = vmatpush1.xpose.msra.mxu0 0.0
    %65 = vmatprep.subr.mxu0 0.0
    %66 = vmatpush1.xpose.msra.mxu0 0.0
    %67 = vmatprep.subr.mxu0 0.0
    %68 = vmatpush1.xpose.msra.mxu0 0.0
    %69 = vmatprep.subr.mxu0 0.0
    %70 = vmatpush1.xpose.msra.mxu0 0.0
    %71 = vmatprep.subr.mxu0 0.0
    %72 = vmatpush1.xpose.msra.mxu0 0.0
    %73 = vmatprep.subr.mxu0 0.0
    %74 = vmatpush1.xpose.msra.mxu0 0.0
    %75 = vmatprep.subr.mxu0 0.0
    %76 = vmatpush1.xpose.msra.mxu0 0.0
    %77 = vmatprep.subr.mxu0 0.0
    %78 = vmatpush1.xpose.msra.mxu0 0.0
    %79 = vmatprep.subr.mxu0 0.0
    %80 = vmatpush1.xpose.msra.mxu0 0.0
    %81 = vmatprep.subr.mxu0 0.0
    %82 = vmatpush1.xpose.msra.mxu0 0.0
    %83 = vmatprep.subr.mxu0 0.0
    %84 = vmatpush1.xpose.msra.mxu0 0.0
    %85 = vmatprep.subr.mxu0 0.0
    %86 = vmatpush1.xpose.msra.mxu0 0.0
    %87 = vmatprep.subr.mxu0 0.0
    %88 = vmatpush1.xpose.msra.mxu0 0.0
    %89 = vmatprep.subr.mxu0 0.0
    %90 = vmatpush1.xpose.msra.mxu0 0.0
    %91 = vmatprep.subr.mxu0 0.0
    %92 = vmatpush1.xpose.msra.mxu0 0.0
    %93 = vmatprep.subr.mxu0 0.0
    %94 = vmatpush1.xpose.msra.mxu0 0.0
    %95 = vmatprep.subr.mxu0 0.0
    %96 = vmatpush1.xpose.msra.mxu0 0.0
    %97 = vmatprep.subr.mxu0 0.0
    %98 = vmatpush1.xpose.msra.mxu0 0.0
    %99 = vmatprep.subr.mxu0 0.0
    %100 = vmatpush1.xpose.msra.mxu0 0.0
    %101 = vmatprep.subr.mxu0 0.0
    %102 = vmatpush1.xpose.msra.mxu0 0.0
    %103 = vmatprep.subr.mxu0 0.0
    %104 = vmatpush1.xpose.msra.mxu0 0.0
    %105 = vmatprep.subr.mxu0 0.0
    %106 = vmatpush1.xpose.msra.mxu0 0.0
    %107 = vmatprep.subr.mxu0 0.0
    %108 = vmatpush1.xpose.msra.mxu0 0.0
    %109 = vmatprep.subr.mxu0 0.0
    %110 = vmatpush1.xpose.msra.mxu0 0.0
    %111 = vmatprep.subr.mxu0 0.0
    %112 = vmatpush1.xpose.msra.mxu0 0.0
    %113 = vmatprep.subr.mxu0 0.0
    %114 = vmatpush1.xpose.msra.mxu0 0.0
    %115 = vmatprep.subr.mxu0 0.0
    %116 = vmatpush1.xpose.msra.mxu0 0.0
    %117 = vmatprep.subr.mxu0 0.0
    %118 = vmatpush1.xpose.msra.mxu0 0.0
    %119 = vmatprep.mubr.f32.mxu0 0.0
    %120 = vmatmul.mubr.f32.gmra.mrb[0].mxu0 %v47
    %v121 = vpop.f32.mrb[0].mxu0
    %v122 = vadd.f32 %v44, %v121
    %v123 = vpop.f32.mrb[0].mxu0
    %124 = vdwg.mxu0
    %v125 = vxor.u32 %v122, 2147483648
    %v126 = vmul.f32 %v125, 1.442695
    %v127 = vpow.pop %v126
    %v128 = vadd.f32 %v127, 1.0
    %v129 = vrcp.pop %v128
    %v130 = vmul.f32 1.0, %v129
    %vm131 = vcmask 122880
    %132 = vst.msk [vmem:[#allocation7] sm:$0x1] %vm131, %v130
    // Predicated region
    $region22: #{tpu_custom_call.1} parent=1 // pred_check
      _
    $region23: #{tpu_custom_call.1} parent=1 // pred_check_branch
      %134 = sbr.rel (0) target = $region25
    $region24: #{tpu_custom_call.1} parent=1 // pred_region
      %s136 = ssub.s32 16, 16
      %137 = vsyncadd [#allocation4], %s136
      %s139 = sshll.u32 [#allocation7], 4
      %s140 = int_to_ptr.vmem [resolvable:$true] %s139
      %142 = dma.vmem_to_hbm [thread:$0]  %s140, 16, %s3, [#allocation4]
    $region25: #{tpu_custom_call.1} parent=1 // pred_fallthru
      _
    // Predicated region
    $region26: #{tpu_custom_call.1} parent=1 // pred_check
      _
    $region27: #{tpu_custom_call.1} parent=1 // pred_check_branch
      %144 = sbr.rel (0) target = $region29
    $region28: #{tpu_custom_call.1} parent=1 // pred_region
      %145 = dma.done [#allocation4], 16
    $region29: #{tpu_custom_call.1} parent=1 // pred_fallthru
      _
    %146 = vsyncpa [#allocation3], 1
    %147 = vsyncpa [#allocation6], 1
    %148 = vsyncpa [#allocation4], 1

</llo_original>
